<compile_context>
chip_gen: v6e
topology: v6e:2x2x1
jax: 0.10.0
libtpu: 0.0.40
codegen_flags: <defaults>
</compile_context>

<pallas_src>
import jax
import jax.numpy as jnp
from jax.experimental import pallas as pl
from jax.experimental.pallas import tpu as pltpu

_LANE_WIDTH = 1024                      # lane-dense slab width (multiple of 128)
_TILE_BUDGET_BYTES = 6 * 1024 * 1024    # a+b+out, double-buffered, per grid step


def _ordered_kernel(a_ref, b_ref, o_ref):
    # Elementwise relu(a - b) on the current (tm, C) tile.  Pure VPU work; the
    # scalar 0 avoids materializing a zero tile, and dtypes match so no cast.
    o_ref[...] = jnp.maximum(a_ref[...] - b_ref[...], 0)


def _ceil_to(x, m):
    return -(-x // m) * m


def _sublane_multiple(dtype):
    # 32-bit: 8 sublanes; sub-32-bit dtypes pack along sublanes (bf16 -> 16, i8 -> 32).
    return max(8, 32 // jnp.dtype(dtype).itemsize)


def ordered_morphism(a, b):
    """Forward of OrderedMorphism: relu(a - b), any matching shapes / dtypes."""
    assert a.shape == b.shape, "a and b must have the same shape"
    assert a.dtype == b.dtype, "a and b must have the same dtype"

    orig_shape = a.shape
    dtype = a.dtype
    n = a.size
    if n == 0:
        return jnp.maximum(a - b, 0)

    itemsize = jnp.dtype(dtype).itemsize

    # --- Lane-dense reshape: the op is elementwise, so the caller's shape is
    # irrelevant. Stream the flat element range through a (rows, cols) slab
    # whose last dim is a wide multiple of 128 (unmasked vector stores).
    cols = min(_LANE_WIDTH, _ceil_to(n, 128))
    padded = _ceil_to(n, cols)
    rows = padded // cols

    a1 = a.reshape(-1)
    b1 = b.reshape(-1)
    if padded != n:
        a1 = jnp.pad(a1, (0, padded - n))
        b1 = jnp.pad(b1, (0, padded - n))
    a2 = a1.reshape(rows, cols)
    b2 = b1.reshape(rows, cols)

    # --- Row tile: bound the double-buffered working set (3 arrays x 2 buffers)
    # to ~6 MiB, i.e. ~1 MiB per buffer -> fits v5e/v6e/v7x scoped VMEM defaults
    # while staying near the HBM roofline.
    sub = _sublane_multiple(dtype)
    per_row_bytes = cols * itemsize * 3 * 2
    tm = (_TILE_BUDGET_BYTES // per_row_bytes) // sub * sub
    tm = max(sub, tm)
    tm = min(tm, rows)  # tm == rows -> full-dim block, always legal

    grid = (pl.cdiv(rows, tm),)
    block = pl.BlockSpec((tm, cols), lambda i: (i, 0))

    cost = pl.CostEstimate(
        flops=2 * n,                      # subtract + max per element
        transcendentals=0,
        bytes_accessed=3 * n * itemsize,  # pure HBM streaming
    )

    out2 = pl.pallas_call(
        _ordered_kernel,
        out_shape=jax.ShapeDtypeStruct((rows, cols), dtype),
        grid_spec=pl.GridSpec(
            grid=grid,
            in_specs=[block, block],
            out_specs=block,
        ),
        compiler_params=pltpu.CompilerParams(
            # Independent row tiles. Swap to pltpu.CORE_PARALLEL on v7x to
            # split the stream across both TensorCores.
            dimension_semantics=("parallel",),
        ),
        cost_estimate=cost,
    )(a2, b2)

    return out2.reshape(-1)[:n].reshape(orig_shape)


if __name__ == "__main__":
    key = jax.random.PRNGKey(0)
    keys = jax.random.split(key, 8)

    def check(a, b, name):
        out = ordered_morphism(a, b)
        jax.block_until_ready(out)
        ref = jnp.maximum(a - b, 0)
        assert out.shape == a.shape and out.dtype == a.dtype, name
        assert jnp.allclose(out, ref, atol=1e-6, rtol=1e-6), f"mismatch ({name})"

    # Primary small case consistent with an elementwise module: (2, 4, 16, 16).
    a = jax.random.normal(keys[0], (2, 4, 16, 16), jnp.float32)
    b = jax.random.normal(keys[1], (2, 4, 16, 16), jnp.float32)
    check(a, b, "4d small")

    # Tiny, non-lane-dense caller shape (handled via the lane-dense reshape).
    a = jax.random.normal(keys[2], (8, 32), jnp.float32)
    b = jax.random.normal(keys[3], (8, 32), jnp.float32)
    check(a, b, "tiny (8,32)")

    # Already lane-dense batch of embeddings.
    a = jax.random.normal(keys[4], (64, 128), jnp.float32)
    b = jax.random.normal(keys[5], (64, 128), jnp.float32)
    check(a, b, "(64,128)")

    # Larger case that exercises a multi-step grid with a partial last row tile.
    a = jax.random.normal(keys[6], (512, 640), jnp.float32)
    b = jax.random.normal(keys[7], (512, 640), jnp.float32)
    check(a, b, "grid>1 with partial tile")

    print("KERNEL_OK")
</pallas_src>

<mosaic_0001>
module attributes {stable_mosaic.version = 11 : i64} {
  func.func @_ordered_kernel(%arg0: i32, %arg1: memref<2x1024xf32, #tpu.memory_space<vmem>>, %arg2: memref<2x1024xf32, #tpu.memory_space<vmem>>, %arg3: memref<2x1024xf32, #tpu.memory_space<vmem>>) attributes {dimension_semantics = [#tpu.dimension_semantics<parallel>], iteration_bounds = array<i64: 1>, scalar_prefetch = 0 : i64, scratch_operands = 0 : i64, tpu.core_type = #tpu.core_type<tc>, window_params = [{transform_indices = @transform_0, window_bounds = array<i64: 2, 1024>}, {transform_indices = @transform_1, window_bounds = array<i64: 2, 1024>}, {transform_indices = @transform_2, window_bounds = array<i64: 2, 1024>}]} {
    %c0 = arith.constant 0 : index
    %c0_0 = arith.constant 0 : index
    %0 = vector.load %arg1[%c0, %c0_0] : memref<2x1024xf32, #tpu.memory_space<vmem>>, vector<2x1024xf32>
    %c0_1 = arith.constant 0 : index
    %c0_2 = arith.constant 0 : index
    %1 = vector.load %arg2[%c0_1, %c0_2] : memref<2x1024xf32, #tpu.memory_space<vmem>>, vector<2x1024xf32>
    %2 = arith.subf %0, %1 : vector<2x1024xf32>
    %cst = arith.constant 0.000000e+00 : f32
    %3 = vector.broadcast %cst : f32 to vector<2x1024xf32>
    %4 = arith.maximumf %2, %3 : vector<2x1024xf32>
    %c0_3 = arith.constant 0 : index
    %c0_4 = arith.constant 0 : index
    %5 = vector.load %arg3[%c0_3, %c0_4] : memref<2x1024xf32, #tpu.memory_space<vmem>>, vector<2x1024xf32>
    tpu.vector_store %arg3[%c0_3, %c0_4], %4 {strides = array<i32>} : memref<2x1024xf32, #tpu.memory_space<vmem>>, vector<2x1024xf32>,
    return
  }
  func.func @transform_0(%arg0: i32) -> (i32, i32) {
    %c0_i32 = arith.constant 0 : i32
    %c0_i32_0 = arith.constant 0 : i32
    return %arg0, %c0_i32 : i32, i32
  }
  func.func @transform_1(%arg0: i32) -> (i32, i32) {
    %c0_i32 = arith.constant 0 : i32
    %c0_i32_0 = arith.constant 0 : i32
    return %arg0, %c0_i32 : i32, i32
  }
  func.func @transform_2(%arg0: i32) -> (i32, i32) {
    %c0_i32 = arith.constant 0 : i32
    %c0_i32_0 = arith.constant 0 : i32
    return %arg0, %c0_i32 : i32, i32
  }
}

</mosaic_0001>

<llo_original>
// kernel: tpu_custom_call.1
$region0: #{tpu_custom_call.1}
  #allocation0 [shape = 'u32[]', space=smem, size = 0x4, offset = 0x4, fixed_abs, tag = 'smem constant byte address 0x4 - core index']
  #allocation1 [shape = 'u32[144,128]{1,0:T(1,128)}', space=vmem, size = 0x12000, scoped, tag = 'internal scratch']
  %s0 = inlined_call_operand.hbm [shape: f32[2,1024], index: 0, kind: input, shape index: {}]
  %s1 = inlined_call_operand.hbm [shape: f32[2,1024], index: 1, kind: input, shape index: {}]
  %s2 = inlined_call_operand.hbm [shape: f32[2,1024], index: 2, kind: output, shape index: {}]
  %s3 = sld [smem:[#allocation0]]
  $region26: #{tpu_custom_call.1} parent=0
    _
  %s5 = ssub.s32 1, %s3
  %s6 = scalar_select 0, %s5, %s3
  $region1: #{tpu_custom_call.1} parent=0
    #allocation2 [shape = 'u8[8192]{0}', space=vmem, size = 0x2000, scoped, tag = 'input window, operand 0, single buffered']
    #allocation3 [shape = 's32[1]{0}', space=sflag, size = 0x4, scoped, tag = 'scoped memory for tpu_custom_call.1']
    #allocation4 [shape = 's32[1]{0}', space=sflag, size = 0x4, scoped, tag = 'scoped memory for tpu_custom_call.1']
    #allocation5 [shape = 'u8[8192]{0}', space=vmem, size = 0x2000, scoped, tag = 'input window, operand 1, single buffered']
    #allocation6 [shape = 's32[1]{0}', space=sflag, size = 0x4, scoped, tag = 'scoped memory for tpu_custom_call.1']
    #allocation7 [shape = 'u8[8192]{0}', space=vmem, size = 0x2000, scoped, tag = 'output window, operand 0, single buffered']
    %7 = vsyncpa [#allocation3], 0
    %8 = vsyncpa [#allocation6], 0
    %9 = vsyncpa [#allocation4], 0
    // Predicated region
    $region2: #{tpu_custom_call.1} parent=1 // pred_check
      _
    $region3: #{tpu_custom_call.1} parent=1 // pred_check_branch
      %11 = sbr.rel (0) target = $region5
    $region4: #{tpu_custom_call.1} parent=1 // pred_region
      %s13 = ssub.s32 256, 256
      %14 = vsyncadd [#allocation3], %s13
      %s16 = sshll.u32 [#allocation2], 4
      %s17 = int_to_ptr.vmem [resolvable:$true] %s16
      %19 = dma.hbm_to_vmem [thread:$0]  %s0, 256, %s17, [#allocation3]
    $region5: #{tpu_custom_call.1} parent=1 // pred_fallthru
      _
    // Predicated region
    $region6: #{tpu_custom_call.1} parent=1 // pred_check
      _
    $region7: #{tpu_custom_call.1} parent=1 // pred_check_branch
      %21 = sbr.rel (0) target = $region9
    $region8: #{tpu_custom_call.1} parent=1 // pred_region
      %s23 = ssub.s32 256, 256
      %24 = vsyncadd [#allocation6], %s23
      %s26 = sshll.u32 [#allocation5], 4
      %s27 = int_to_ptr.vmem [resolvable:$true] %s26
      %29 = dma.hbm_to_vmem [thread:$0]  %s1, 256, %s27, [#allocation6]
    $region9: #{tpu_custom_call.1} parent=1 // pred_fallthru
      _
    // Predicated region
    $region10: #{tpu_custom_call.1} parent=1 // pred_check
      _
    $region11: #{tpu_custom_call.1} parent=1 // pred_check_branch
      %31 = sbr.rel (0) target = $region13
    $region12: #{tpu_custom_call.1} parent=1 // pred_region
      %32 = dma.done [#allocation3], 256
    $region13: #{tpu_custom_call.1} parent=1 // pred_fallthru
      _
    // Predicated region
    $region14: #{tpu_custom_call.1} parent=1 // pred_check
      _
    $region15: #{tpu_custom_call.1} parent=1 // pred_check_branch
      %34 = sbr.rel (0) target = $region17
    $region16: #{tpu_custom_call.1} parent=1 // pred_region
      %35 = dma.done [#allocation6], 256
    $region17: #{tpu_custom_call.1} parent=1 // pred_fallthru
      _
    %v36 = vld [vmem:[#allocation2] sm:$0xff]
    %v37 = vld [vmem:[#allocation2 + $0x8] sm:$0xff]
    %v38 = vld [vmem:[#allocation5] sm:$0xff]
    %v39 = vld [vmem:[#allocation5 + $0x8] sm:$0xff]
    %v40 = vsub.f32 %v36, %v38
    %v41 = vsub.f32 %v37, %v39
    %v42 = vmax.f32 %v40, 0.0
    %v43 = vmax.f32 %v41, 0.0
    %44 = vst [vmem:[#allocation7] sm:$0xff] %v42
    %45 = vst [vmem:[#allocation7 + $0x8] sm:$0xff] %v43
    // Predicated region
    $region18: #{tpu_custom_call.1} parent=1 // pred_check
      _
    $region19: #{tpu_custom_call.1} parent=1 // pred_check_branch
      %47 = sbr.rel (0) target = $region21
    $region20: #{tpu_custom_call.1} parent=1 // pred_region
      %s49 = ssub.s32 256, 256
      %50 = vsyncadd [#allocation4], %s49
      %s52 = sshll.u32 [#allocation7], 4
      %s53 = int_to_ptr.vmem [resolvable:$true] %s52
      %55 = dma.vmem_to_hbm [thread:$0]  %s53, 256, %s2, [#allocation4]
    $region21: #{tpu_custom_call.1} parent=1 // pred_fallthru
      _
    // Predicated region
    $region22: #{tpu_custom_call.1} parent=1 // pred_check
      _
    $region23: #{tpu_custom_call.1} parent=1 // pred_check_branch
      %57 = sbr.rel (0) target = $region25
    $region24: #{tpu_custom_call.1} parent=1 // pred_region
      %58 = dma.done [#allocation4], 256
    $region25: #{tpu_custom_call.1} parent=1 // pred_fallthru
      _
    %59 = vsyncpa [#allocation3], 1
    %60 = vsyncpa [#allocation6], 1
    %61 = vsyncpa [#allocation4], 1

</llo_original>
